<compile_context>
chip_gen: v5e
topology: v5e:2x2
jax: 0.10.0
libtpu: 0.0.40
codegen_flags: <defaults>
</compile_context>

<pallas_src>
import math
import functools

import jax
import jax.numpy as jnp
from jax.experimental import pallas as pl
from jax.experimental.pallas import tpu as pltpu


_SQRT_2_OVER_PI = math.sqrt(2.0 / math.pi)


def _gelu_linear_kernel(x_ref, w_ref, b_ref, o_ref, acc_ref):
    """Computes one (tm, tn) output tile; K is the last ('arbitrary') grid axis."""
    k = pl.program_id(2)

    @pl.when(k == 0)
    def _():
        acc_ref[...] = jnp.zeros_like(acc_ref)

    # MXU matmul, f32 accumulation (operands are bf16 when cast in the wrapper).
    acc_ref[...] += jnp.dot(
        x_ref[...], w_ref[...], preferred_element_type=jnp.float32
    )

    @pl.when(k == pl.num_programs(2) - 1)
    def _():
        y = acc_ref[...] + b_ref[...].astype(jnp.float32)
        # tanh-approximate GELU, f32 epilogue (tanh runs on the EUP slot).
        g = 0.5 * y * (1.0 + jnp.tanh(_SQRT_2_OVER_PI * (y + 0.044715 * (y * y * y))))
        o_ref[...] = g.astype(o_ref.dtype)


def _round_up(x, n):
    return (x + n - 1) // n * n


@functools.partial(jax.jit, static_argnames=("tm", "tn", "tk", "use_bf16_matmul"))
def gelu_proj(x, w, b, *, tm=256, tn=256, tk=512, use_bf16_matmul=True):
    """x: (..., dim), w: (dim, dim_out) (= PyTorch weight.T), b: (dim_out,)."""
    dim, dim_out = w.shape
    lead = x.shape[:-1]
    m = 1
    for d in lead:
        m *= d
    out_dtype = x.dtype

    x2 = x.reshape(m, dim)
    b2 = b.reshape(1, dim_out)

    # bf16 MXU operands + halved HBM traffic; accumulation stays f32 in-kernel.
    if use_bf16_matmul:
        x2 = x2.astype(jnp.bfloat16)
        w = w.astype(jnp.bfloat16)

    # Dtype-aware tile legalisation: second-to-last block dims must be a
    # multiple of the sublane pack (8 for 32-bit, 16 for bf16) or the full
    # extent; last block dims a multiple of 128 or the full extent.
    sub = 16 if x2.dtype == jnp.bfloat16 else 8
    tm_ = _round_up(min(tm, _round_up(m, sub)), sub)
    tn_ = dim_out if dim_out <= tn else _round_up(tn, 128)
    if dim <= tk:
        tk_ = dim
    else:
        tk_ = _round_up(tk, 128)
        k_pad = _round_up(dim, tk_) - dim
        if k_pad:
            # Zero-pad K so partial reduction tiles add exactly zero to acc.
            x2 = jnp.pad(x2, ((0, 0), (0, k_pad)))
            w = jnp.pad(w, ((0, k_pad), (0, 0)))
    dim_p = x2.shape[1]

    grid = (pl.cdiv(m, tm_), pl.cdiv(dim_out, tn_), dim_p // tk_)

    cost = pl.CostEstimate(
        flops=2 * m * dim * dim_out,
        transcendentals=m * dim_out,
        bytes_accessed=(
            x2.size * x2.dtype.itemsize
            + w.size * w.dtype.itemsize
            + b2.size * b2.dtype.itemsize
            + m * dim_out * jnp.dtype(out_dtype).itemsize
        ),
    )

    out2 = pl.pallas_call(
        _gelu_linear_kernel,
        out_shape=jax.ShapeDtypeStruct((m, dim_out), out_dtype),
        grid_spec=pltpu.PrefetchScalarGridSpec(
            num_scalar_prefetch=0,
            grid=grid,
            in_specs=[
                pl.BlockSpec((tm_, tk_), lambda i, j, k: (i, k)),   # x tile
                pl.BlockSpec((tk_, tn_), lambda i, j, k: (k, j)),   # W tile
                pl.BlockSpec((1, tn_), lambda i, j, k: (0, j)),     # bias tile
            ],
            out_specs=pl.BlockSpec((tm_, tn_), lambda i, j, k: (i, j)),
            scratch_shapes=[pltpu.VMEM((tm_, tn_), jnp.float32)],
        ),
        compiler_params=pltpu.CompilerParams(
            dimension_semantics=("parallel", "parallel", "arbitrary"),
        ),
        cost_estimate=cost,
    )(x2, w, b2)
    return out2.reshape(*lead, dim_out)


def init_gelu_params(key, dim, dim_out, dtype=jnp.float32):
    """Deterministic init matching nn.Linear default (uniform +-1/sqrt(dim))."""
    kw, kb = jax.random.split(key)
    bound = 1.0 / math.sqrt(dim)
    # PyTorch weight is (dim_out, dim); we store its transpose (dim, dim_out).
    w = jax.random.uniform(kw, (dim, dim_out), dtype, minval=-bound, maxval=bound)
    b = jax.random.uniform(kb, (dim_out,), dtype, minval=-bound, maxval=bound)
    return w, b


if __name__ == "__main__":
    key = jax.random.PRNGKey(0)
    k_x, k_p = jax.random.split(key)

    batch, seq, dim, dim_out = 2, 8, 32, 64
    x = jax.random.normal(k_x, (batch, seq, dim), jnp.float32)
    w, b = init_gelu_params(k_p, dim, dim_out)

    out = gelu_proj(x, w, b)
    out = jax.block_until_ready(out)
    assert out.shape == (batch, seq, dim_out)

    # Reference with the same bf16-operand / f32-accumulate matmul semantics.
    y_bf = jnp.dot(
        x.reshape(-1, dim).astype(jnp.bfloat16),
        w.astype(jnp.bfloat16),
        preferred_element_type=jnp.float32,
    ).reshape(batch, seq, dim_out) + b
    ref_bf = 0.5 * y_bf * (
        1.0 + jnp.tanh(_SQRT_2_OVER_PI * (y_bf + 0.044715 * y_bf**3))
    )
    assert jnp.allclose(out, ref_bf.astype(out.dtype), atol=1e-4, rtol=1e-4)

    # Loose sanity check against the pure-f32 module semantics.
    y_f32 = x @ w + b
    ref_f32 = 0.5 * y_f32 * (
        1.0 + jnp.tanh(_SQRT_2_OVER_PI * (y_f32 + 0.044715 * y_f32**3))
    )
    assert jnp.allclose(out, ref_f32, atol=5e-2, rtol=5e-2)

    print("KERNEL_OK")
</pallas_src>

<mosaic_0001>
module attributes {stable_mosaic.version = 11 : i64} {
  func.func @_gelu_linear_kernel(%arg0: i32, %arg1: i32, %arg2: i32, %arg3: memref<16x32xbf16, #tpu.memory_space<vmem>>, %arg4: memref<32x64xbf16, #tpu.memory_space<vmem>>, %arg5: memref<1x64xf32, #tpu.memory_space<vmem>>, %arg6: memref<16x64xf32, #tpu.memory_space<vmem>>, %arg7: memref<16x64xf32, #tpu.memory_space<vmem>>) attributes {dimension_semantics = [#tpu.dimension_semantics<parallel>, #tpu.dimension_semantics<parallel>, #tpu.dimension_semantics<arbitrary>], iteration_bounds = array<i64: 1, 1, 1>, scalar_prefetch = 0 : i64, scratch_operands = 1 : i64, tpu.core_type = #tpu.core_type<tc>, window_params = [{transform_indices = @transform_0, window_bounds = array<i64: 16, 32>}, {transform_indices = @transform_1, window_bounds = array<i64: 32, 64>}, {transform_indices = @transform_2, window_bounds = array<i64: 1, 64>}, {transform_indices = @transform_3, window_bounds = array<i64: 16, 64>}]} {
    %c0_i32 = arith.constant 0 : i32
    %0 = arith.cmpi eq, %arg2, %c0_i32 : i32
    %1 = arith.extui %0 : i1 to i32
    %c0_i32_0 = arith.constant 0 : i32
    %2 = arith.cmpi ne, %1, %c0_i32_0 : i32
    scf.if %2 {
      %cst_10 = arith.constant 0.000000e+00 : f32
      %12 = vector.broadcast %cst_10 : f32 to vector<16x64xf32>
      %c0_11 = arith.constant 0 : index
      %c0_12 = arith.constant 0 : index
      %13 = vector.load %arg7[%c0_11, %c0_12] : memref<16x64xf32, #tpu.memory_space<vmem>>, vector<16x64xf32>
      tpu.vector_store %arg7[%c0_11, %c0_12], %12 {strides = array<i32>} : memref<16x64xf32, #tpu.memory_space<vmem>>, vector<16x64xf32>,
    } else {
    }
    %c0 = arith.constant 0 : index
    %c0_1 = arith.constant 0 : index
    %3 = vector.load %arg7[%c0, %c0_1] : memref<16x64xf32, #tpu.memory_space<vmem>>, vector<16x64xf32>
    %c0_2 = arith.constant 0 : index
    %c0_3 = arith.constant 0 : index
    %4 = vector.load %arg3[%c0_2, %c0_3] : memref<16x32xbf16, #tpu.memory_space<vmem>>, vector<16x32xbf16>
    %c0_4 = arith.constant 0 : index
    %c0_5 = arith.constant 0 : index
    %5 = vector.load %arg4[%c0_4, %c0_5] : memref<32x64xbf16, #tpu.memory_space<vmem>>, vector<32x64xbf16>
    %cst = arith.constant dense<0.000000e+00> : vector<16x64xf32>
    %6 = tpu.matmul %4, %5, %cst {dimension_numbers = #tpu.dot_dimension_numbers<[1], [0], [0], [1], [0, 0, 1, 1], [], []>} : vector<16x32xbf16>, vector<32x64xbf16>, vector<16x64xf32> -> vector<16x64xf32>
    %7 = arith.addf %3, %6 : vector<16x64xf32>
    %c0_6 = arith.constant 0 : index
    %c0_7 = arith.constant 0 : index
    %8 = vector.load %arg7[%c0_6, %c0_7] : memref<16x64xf32, #tpu.memory_space<vmem>>, vector<16x64xf32>
    tpu.vector_store %arg7[%c0_6, %c0_7], %7 {strides = array<i32>} : memref<16x64xf32, #tpu.memory_space<vmem>>, vector<16x64xf32>,
    %c0_i32_8 = arith.constant 0 : i32
    %9 = arith.cmpi eq, %arg2, %c0_i32_8 : i32
    %10 = arith.extui %9 : i1 to i32
    %c0_i32_9 = arith.constant 0 : i32
    %11 = arith.cmpi ne, %10, %c0_i32_9 : i32
    scf.if %11 {
      %c0_10 = arith.constant 0 : index
      %c0_11 = arith.constant 0 : index
      %12 = vector.load %arg7[%c0_10, %c0_11] : memref<16x64xf32, #tpu.memory_space<vmem>>, vector<16x64xf32>
      %c0_12 = arith.constant 0 : index
      %c0_13 = arith.constant 0 : index
      %13 = vector.load %arg5[%c0_12, %c0_13] : memref<1x64xf32, #tpu.memory_space<vmem>>, vector<1x64xf32>
      %14 = vector.broadcast %13 : vector<1x64xf32> to vector<16x64xf32>
      %15 = arith.addf %12, %14 : vector<16x64xf32>
      %cst_14 = arith.constant 5.000000e-01 : f32
      %16 = vector.broadcast %cst_14 : f32 to vector<16x64xf32>
      %17 = arith.mulf %16, %15 : vector<16x64xf32>
      %18 = arith.mulf %15, %15 : vector<16x64xf32>
      %19 = arith.mulf %18, %15 : vector<16x64xf32>
      %cst_15 = arith.constant 4.471500e-02 : f32
      %20 = vector.broadcast %cst_15 : f32 to vector<16x64xf32>
      %21 = arith.mulf %20, %19 : vector<16x64xf32>
      %22 = arith.addf %15, %21 : vector<16x64xf32>
      %cst_16 = arith.constant 0.797884583 : f32
      %23 = vector.broadcast %cst_16 : f32 to vector<16x64xf32>
      %24 = arith.mulf %23, %22 : vector<16x64xf32>
      %25 = math.tanh %24 : vector<16x64xf32>
      %cst_17 = arith.constant 1.000000e+00 : f32
      %26 = vector.broadcast %cst_17 : f32 to vector<16x64xf32>
      %27 = arith.addf %26, %25 : vector<16x64xf32>
      %28 = arith.mulf %17, %27 : vector<16x64xf32>
      %c0_18 = arith.constant 0 : index
      %c0_19 = arith.constant 0 : index
      %29 = vector.load %arg6[%c0_18, %c0_19] : memref<16x64xf32, #tpu.memory_space<vmem>>, vector<16x64xf32>
      tpu.vector_store %arg6[%c0_18, %c0_19], %28 {strides = array<i32>} : memref<16x64xf32, #tpu.memory_space<vmem>>, vector<16x64xf32>,
    } else {
    }
    return
  }
  func.func @transform_0(%arg0: i32, %arg1: i32, %arg2: i32) -> (i32, i32) {
    %c0_i32 = arith.constant 0 : i32
    return %arg0, %arg2 : i32, i32
  }
  func.func @transform_1(%arg0: i32, %arg1: i32, %arg2: i32) -> (i32, i32) {
    %c0_i32 = arith.constant 0 : i32
    return %arg2, %arg1 : i32, i32
  }
  func.func @transform_2(%arg0: i32, %arg1: i32, %arg2: i32) -> (i32, i32) {
    %c0_i32 = arith.constant 0 : i32
    %c0_i32_0 = arith.constant 0 : i32
    return %c0_i32, %arg1 : i32, i32
  }
  func.func @transform_3(%arg0: i32, %arg1: i32, %arg2: i32) -> (i32, i32) {
    %c0_i32 = arith.constant 0 : i32
    return %arg0, %arg1 : i32, i32
  }
}

</mosaic_0001>

<llo_original>
// kernel: gelu_proj.1
$region0: #{gelu_proj.1}
  #allocation0 [shape = 'u32[]', space=smem, size = 0x4, offset = 0x4, fixed_abs, tag = 'smem constant byte address 0x4 - core index']
  #allocation1 [shape = 'u32[72,128]{1,0:T(1,128)}', space=vmem, size = 0x9000, scoped, tag = 'internal scratch']
  #allocation2 [shape = 'f32[16,64]{1,0:T(8,128)}', space=vmem, size = 0x2000, scoped, tag = 'scratch operand']
  %s0 = inlined_call_operand.vmem [shape: bf16[16,32], index: 0, kind: input, shape index: {}]
  %s1 = inlined_call_operand.vmem [shape: bf16[32,64], index: 1, kind: input, shape index: {}]
  %s2 = inlined_call_operand.vmem [shape: f32[1,64], index: 2, kind: input, shape index: {}]
  %s3 = inlined_call_operand.hbm [shape: f32[16,64], index: 3, kind: output, shape index: {}]
  %s4 = sld [smem:[#allocation0]]
  $region30: #{gelu_proj.1} parent=0
    _
  %s6 = ssub.s32 1, %s4
  %s7 = scalar_select 0, %s6, %s4
  $region1: #{gelu_proj.1} parent=0
    #allocation3 [shape = 'u8[8192]{0}', space=vmem, size = 0x2000, scoped, tag = 'output window, operand 0, single buffered']
    #allocation4 [shape = 's32[1]{0}', space=sflag, size = 0x4, scoped, tag = 'scoped memory for gelu_proj.1']
    %8 = vsyncpa [#allocation4], 0
    // Predicated region
    $region2: #{gelu_proj.1} parent=1 // pred_check
      _
    $region3: #{gelu_proj.1} parent=1 // pred_check_branch
      %10 = sbr.rel (0) target = $region5
    $region4: #{gelu_proj.1} parent=1 // pred_region
      _
    $region5: #{gelu_proj.1} parent=1 // pred_fallthru
      _
    // Predicated region
    $region6: #{gelu_proj.1} parent=1 // pred_check
      _
    $region7: #{gelu_proj.1} parent=1 // pred_check_branch
      %12 = sbr.rel (0) target = $region9
    $region8: #{gelu_proj.1} parent=1 // pred_region
      _
    $region9: #{gelu_proj.1} parent=1 // pred_fallthru
      _
    // Predicated region
    $region10: #{gelu_proj.1} parent=1 // pred_check
      _
    $region11: #{gelu_proj.1} parent=1 // pred_check_branch
      %14 = sbr.rel (0) target = $region13
    $region12: #{gelu_proj.1} parent=1 // pred_region
      _
    $region13: #{gelu_proj.1} parent=1 // pred_fallthru
      _
    %p16 = scmp.eq.s32.totalorder 0, 0
    // Predicated region
    $region14: #{gelu_proj.1} parent=1 // pred_check
      %p17 = pneg %p16
    $region15: #{gelu_proj.1} parent=1 // pred_check_branch
      %19 = sbr.rel (%p17) target = $region17
    $region16: #{gelu_proj.1} parent=1 // pred_region
      %vm20 = vcmask 523264
      %21 = vst.msk [vmem:[#allocation2] sm:$0xff] %vm20, 0.0
      %22 = vst.msk [vmem:[#allocation2 + $0x8] sm:$0xff] %vm20, 0.0
    $region17: #{gelu_proj.1} parent=1 // pred_fallthru
      _
    %v23 = vld [vmem:[#allocation2] sm:$0xff]
    %v24 = vld [vmem:[#allocation2 + $0x8] sm:$0xff]
    %v25 = vld [vmem:[%s0] sm:$0xf]
    %v26 = vld [vmem:[%s0 + $0x4] sm:$0xf]
    %v27 = vld [vmem:[%s1] sm:$0xf]
    %v28 = vld [vmem:[%s1 + $0x4] sm:$0xf]
    %v29 = vld [vmem:[%s1 + $0x8] sm:$0xf]
    %v30 = vld [vmem:[%s1 + $0xc] sm:$0xf]
    %v33 = vunpack.c.l.b16 %v25
    %v34 = vunpack.c.l.b16 %v26
    %v35 = vpack.c.b16 %v34, %v33
    %v40 = vunpack.c.l.b16 %v27
    %v41 = vunpack.c.l.b16 %v28
    %v42 = vunpack.c.l.b16 %v29
    %v43 = vunpack.c.l.b16 %v30
    %v44 = vpack.c.b16 %v41, %v40
    %v45 = vpack.c.b16 %v43, %v42
    %vm48 = vcmask 261120
    %v50 = vsel %vm48, %v35, 0
    %52 = vmatpush.bf16.msra.mxu0 0
    %53 = vmatpush.bf16.msra.mxu0 0
    %54 = vmatpush.bf16.msra.mxu0 0
    %55 = vmatpush.bf16.msra.mxu0 0
    %56 = vmatpush.bf16.msra.mxu0 0
    %57 = vmatpush.bf16.msra.mxu0 0
    %58 = vmatpush.bf16.msra.mxu0 %v45
    %59 = vmatpush.bf16.msra.mxu0 %v44
    %60 = vmatmul.bf16.gmra.mxu0 %v50
    %v61 = vpop.f32.mrf.mxu0
    %v62 = vadd.f32 0.0, %v61
    %v63 = vpop.f32.mrf.mxu0
    %v64 = vadd.f32 0.0, %v63
    %65 = vdwg.mxu0
    %v66 = vadd.f32 %v23, %v62
    %v67 = vadd.f32 %v24, %v64
    %vm68 = vcmask 523264
    %69 = vst.msk [vmem:[#allocation2] sm:$0xff] %vm68, %v66
    %70 = vst.msk [vmem:[#allocation2 + $0x8] sm:$0xff] %vm68, %v67
    // Predicated region
    $region18: #{gelu_proj.1} parent=1 // pred_check
      %p71 = pneg %p16
    $region19: #{gelu_proj.1} parent=1 // pred_check_branch
      %73 = sbr.rel (%p71) target = $region21
    $region20: #{gelu_proj.1} parent=1 // pred_region
      %v74 = vld [vmem:[#allocation2] sm:$0xff]
      %v75 = vld [vmem:[#allocation2 + $0x8] sm:$0xff]
      %v76 = vld [vmem:[%s2] sm:$0x1]
      %v78 = vperm.slane %v76, 0
      %v80 = vadd.f32 %v74, %v78
      %v81 = vadd.f32 %v75, %v78
      %v82 = vmul.f32 %v80, 0.5
      %v83 = vmul.f32 %v81, 0.5
      %v84 = vmul.f32 %v80, %v80
      %v85 = vmul.f32 %v81, %v81
      %v86 = vmul.f32 %v84, %v80
      %v87 = vmul.f32 %v85, %v81
      %v88 = vmul.f32 %v86, 0.044715
      %v89 = vmul.f32 %v87, 0.044715
      %v90 = vadd.f32 %v80, %v88
      %v91 = vadd.f32 %v81, %v89
      %v92 = vmul.f32 %v90, 0.7978846
      %v93 = vmul.f32 %v91, 0.7978846
      %v94 = vtanh.pop %v92
      %v95 = vtanh.pop %v93
      %v96 = vadd.f32 %v94, 1.0
      %v97 = vadd.f32 %v95, 1.0
      %v98 = vmul.f32 %v82, %v96
      %v99 = vmul.f32 %v83, %v97
      %100 = vst.msk [vmem:[#allocation3] sm:$0xff] %vm68, %v98
      %101 = vst.msk [vmem:[#allocation3 + $0x8] sm:$0xff] %vm68, %v99
    $region21: #{gelu_proj.1} parent=1 // pred_fallthru
      _
    // Predicated region
    $region22: #{gelu_proj.1} parent=1 // pred_check
      _
    $region23: #{gelu_proj.1} parent=1 // pred_check_branch
      %103 = sbr.rel (0) target = $region25
    $region24: #{gelu_proj.1} parent=1 // pred_region
      %105 = vsyncadd [#allocation4], 0
      %s106 = sshll.u32 [#allocation3], 4
      %s107 = int_to_ptr.vmem [resolvable:$true] %s106
      %s108 = sshll.u32 %s3, 4
      %s109 = int_to_ptr.hbm [resolvable:$true] %s108
      %114 = dma.vmem_to_hbm [thread:$0]  %s107, 256, %s109, [#allocation4], 128, 128, 8
    $region25: #{gelu_proj.1} parent=1 // pred_fallthru
      _
    // Predicated region
    $region26: #{gelu_proj.1} parent=1 // pred_check
      _
    $region27: #{gelu_proj.1} parent=1 // pred_check_branch
      %116 = sbr.rel (0) target = $region29
    $region28: #{gelu_proj.1} parent=1 // pred_region
      %118 = dma.done [#allocation4], 256
    $region29: #{gelu_proj.1} parent=1 // pred_fallthru
      _
    %119 = vsyncpa [#allocation4], 1

</llo_original>
